<compile_context>
chip_gen: v7x
topology: tpu7x:2x2x1
jax: 0.10.0
libtpu: 0.0.40
codegen_flags: <defaults>
</compile_context>

<pallas_src>
import jax
import jax.numpy as jnp
from jax.experimental import pallas as pl
from jax.experimental.pallas import tpu as pltpu

SUBLANE = 8
MAX_BATCH_TILE = 2048   # ~0.3 MiB f32 x-tile (double-buffered) + tiny out tile; amortizes step overhead
TC_SPLIT_ROWS = 256     # with at least this many rows, force >= 2 tiles so v7x's 2 TCs both get work


def _round_up(n, m):
    return ((n + m - 1) // m) * m


def mlp_kernel(x_ref, w1_ref, b1_ref, w2_ref, b2_ref, w3_ref, b3_ref, o_ref):
    # MXU in native bf16 (weights already bf16; activations cast in VMEM); f32 accumulation.
    # Bias add + ReLU stay f32 on the VPU.
    x = x_ref[...].astype(jnp.bfloat16)
    h1 = jnp.dot(x, w1_ref[...], preferred_element_type=jnp.float32)
    h1 = jnp.maximum(h1 + b1_ref[...], 0.0)
    h2 = jnp.dot(h1.astype(jnp.bfloat16), w2_ref[...], preferred_element_type=jnp.float32)
    h2 = jnp.maximum(h2 + b2_ref[...], 0.0)
    # TODO(synk): dropout(p=0.3) is identity in eval mode; training-mode dropout
    # (pltpu.prng_random_bits mask) intentionally not applied here.
    o_ref[...] = (
        jnp.dot(h2.astype(jnp.bfloat16), w3_ref[...], preferred_element_type=jnp.float32)
        + b3_ref[...]
    )


@jax.jit
def yoga_pose_classifier(x, params):
    w1, b1, w2, b2, w3, b3 = params
    batch, in_features = x.shape
    hidden1 = w1.shape[1]
    hidden2 = w2.shape[1]
    num_classes = w3.shape[1]

    # One-time bf16 cast of the tiny VMEM-resident weights; biases stay f32 for the epilogue.
    w1b = w1.astype(jnp.bfloat16)
    w2b = w2.astype(jnp.bfloat16)
    w3b = w3.astype(jnp.bfloat16)

    # Batch tiling: cdiv-based (no tail blowup), big tiles to amortize per-step overhead,
    # >= 2 tiles when there is enough work so the "parallel" axis shards across v7x's two
    # TensorCores. The last tile may be partial: its out-of-bounds rows hold garbage in
    # VMEM but every batch row is independent and OOB rows are masked on writeback.
    rows = _round_up(batch, SUBLANE)
    n_tiles = pl.cdiv(rows, MAX_BATCH_TILE)
    if rows >= TC_SPLIT_ROWS:
        n_tiles = max(n_tiles, 2)
    tb = _round_up(pl.cdiv(rows, n_tiles), SUBLANE)
    n_tiles = pl.cdiv(batch, tb)

    resident = lambda a: pl.BlockSpec(a.shape, lambda i: (0, 0))

    flops = 2 * batch * (in_features * hidden1 + hidden1 * hidden2 + hidden2 * num_classes)
    bytes_accessed = (
        4 * batch * (in_features + num_classes)                                     # f32 x in, logits out
        + 2 * (in_features * hidden1 + hidden1 * hidden2 + hidden2 * num_classes)   # bf16 weights
        + 4 * (hidden1 + hidden2 + num_classes)                                     # f32 biases
    )

    return pl.pallas_call(
        mlp_kernel,
        out_shape=jax.ShapeDtypeStruct((batch, num_classes), jnp.float32),
        grid=(n_tiles,),
        in_specs=[
            pl.BlockSpec((tb, in_features), lambda i: (i, 0)),  # batch-tiled activations, real K (no pad pass)
            resident(w1b), resident(b1),
            resident(w2b), resident(b2),
            resident(w3b), resident(b3),
        ],
        # Logits at their real width: a few masked bytes per row instead of a 128-lane slab
        # plus a post-kernel slice pass.
        out_specs=pl.BlockSpec((tb, num_classes), lambda i: (i, 0)),
        compiler_params=pltpu.CompilerParams(
            dimension_semantics=("parallel",),          # shards batch tiles across v7x's 2 TCs
            vmem_limit_bytes=32 * 1024 * 1024,          # headroom over v5e's 16 MiB default scoped VMEM
        ),
        cost_estimate=pl.CostEstimate(
            flops=flops, bytes_accessed=bytes_accessed, transcendentals=0),
    )(x, w1b, b1, w2b, b2, w3b, b3)


def init_linear(key, fan_in, fan_out):
    # Deterministic init mimicking PyTorch's default uniform(-1/sqrt(fan_in), 1/sqrt(fan_in)).
    kw, kb = jax.random.split(key)
    bound = 1.0 / jnp.sqrt(float(fan_in))
    w = jax.random.uniform(kw, (fan_in, fan_out), jnp.float32, -bound, bound)
    b = jax.random.uniform(kb, (1, fan_out), jnp.float32, -bound, bound)
    return w, b


if __name__ == "__main__":
    # Small shapes consistent with the module: 17 keypoints * 2 coords = 34 features.
    batch = 8
    input_size = 34
    hidden_size = 64
    num_classes = 5

    key = jax.random.PRNGKey(0)
    kx, k1, k2, k3 = jax.random.split(key, 4)

    x = jax.random.normal(kx, (batch, input_size), jnp.float32)
    w1, b1 = init_linear(k1, input_size, hidden_size)
    w2, b2 = init_linear(k2, hidden_size, hidden_size // 2)
    w3, b3 = init_linear(k3, hidden_size // 2, num_classes)
    params = (w1, b1, w2, b2, w3, b3)

    out = jax.block_until_ready(yoga_pose_classifier(x, params))
    assert out.shape == (batch, num_classes)

    # Reference 1: same bf16-weight recipe in plain JAX (tight tolerance, MXU vs MXU).
    bf = jnp.bfloat16
    h = jnp.maximum(jnp.dot(x.astype(bf), w1.astype(bf), preferred_element_type=jnp.float32) + b1, 0.0)
    h = jnp.maximum(jnp.dot(h.astype(bf), w2.astype(bf), preferred_element_type=jnp.float32) + b2, 0.0)
    ref_bf16 = jnp.dot(h.astype(bf), w3.astype(bf), preferred_element_type=jnp.float32) + b3
    assert jnp.allclose(out, ref_bf16, atol=2e-3, rtol=2e-3)

    # Reference 2: full-f32 eval-mode module (dropout = identity); loose tolerance for the
    # bf16 MXU path.
    h32 = jnp.maximum(x @ w1 + b1, 0.0)
    h32 = jnp.maximum(h32 @ w2 + b2, 0.0)
    ref_f32 = h32 @ w3 + b3
    assert jnp.allclose(out, ref_f32, atol=5e-2, rtol=5e-2)

    print("KERNEL_OK")
</pallas_src>

<mosaic_0001>
module attributes {stable_mosaic.version = 11 : i64} {
  func.func @mlp_kernel(%arg0: i32, %arg1: memref<8x34xf32, #tpu.memory_space<vmem>>, %arg2: memref<34x64xbf16, #tpu.memory_space<vmem>>, %arg3: memref<1x64xf32, #tpu.memory_space<vmem>>, %arg4: memref<64x32xbf16, #tpu.memory_space<vmem>>, %arg5: memref<1x32xf32, #tpu.memory_space<vmem>>, %arg6: memref<32x5xbf16, #tpu.memory_space<vmem>>, %arg7: memref<1x5xf32, #tpu.memory_space<vmem>>, %arg8: memref<8x5xf32, #tpu.memory_space<vmem>>) attributes {dimension_semantics = [#tpu.dimension_semantics<parallel>], iteration_bounds = array<i64: 1>, scalar_prefetch = 0 : i64, scratch_operands = 0 : i64, tpu.core_type = #tpu.core_type<tc>, window_params = [{transform_indices = @transform_0, window_bounds = array<i64: 8, 34>}, {pipeline_mode = #tpu.pipeline_mode<synchronous>, transform_indices = @transform_1, window_bounds = array<i64: 34, 64>}, {pipeline_mode = #tpu.pipeline_mode<synchronous>, transform_indices = @transform_2, window_bounds = array<i64: 1, 64>}, {pipeline_mode = #tpu.pipeline_mode<synchronous>, transform_indices = @transform_3, window_bounds = array<i64: 64, 32>}, {pipeline_mode = #tpu.pipeline_mode<synchronous>, transform_indices = @transform_4, window_bounds = array<i64: 1, 32>}, {pipeline_mode = #tpu.pipeline_mode<synchronous>, transform_indices = @transform_5, window_bounds = array<i64: 32, 5>}, {pipeline_mode = #tpu.pipeline_mode<synchronous>, transform_indices = @transform_6, window_bounds = array<i64: 1, 5>}, {transform_indices = @transform_7, window_bounds = array<i64: 8, 5>}]} {
    %c0 = arith.constant 0 : index
    %c0_0 = arith.constant 0 : index
    %0 = vector.load %arg1[%c0, %c0_0] : memref<8x34xf32, #tpu.memory_space<vmem>>, vector<8x34xf32>
    %1 = arith.truncf %0 : vector<8x34xf32> to vector<8x34xbf16>
    %c0_1 = arith.constant 0 : index
    %c0_2 = arith.constant 0 : index
    %2 = vector.load %arg2[%c0_1, %c0_2] : memref<34x64xbf16, #tpu.memory_space<vmem>>, vector<34x64xbf16>
    %cst = arith.constant dense<0.000000e+00> : vector<8x64xf32>
    %3 = tpu.matmul %1, %2, %cst {dimension_numbers = #tpu.dot_dimension_numbers<[1], [0], [0], [1], [0, 0, 1, 1], [], []>} : vector<8x34xbf16>, vector<34x64xbf16>, vector<8x64xf32> -> vector<8x64xf32>
    %c0_3 = arith.constant 0 : index
    %c0_4 = arith.constant 0 : index
    %4 = vector.load %arg3[%c0_3, %c0_4] : memref<1x64xf32, #tpu.memory_space<vmem>>, vector<1x64xf32>
    %5 = vector.broadcast %4 : vector<1x64xf32> to vector<8x64xf32>
    %6 = arith.addf %3, %5 : vector<8x64xf32>
    %cst_5 = arith.constant 0.000000e+00 : f32
    %7 = vector.broadcast %cst_5 : f32 to vector<8x64xf32>
    %8 = arith.maximumf %6, %7 : vector<8x64xf32>
    %9 = arith.truncf %8 : vector<8x64xf32> to vector<8x64xbf16>
    %c0_6 = arith.constant 0 : index
    %c0_7 = arith.constant 0 : index
    %10 = vector.load %arg4[%c0_6, %c0_7] : memref<64x32xbf16, #tpu.memory_space<vmem>>, vector<64x32xbf16>
    %cst_8 = arith.constant dense<0.000000e+00> : vector<8x32xf32>
    %11 = tpu.matmul %9, %10, %cst_8 {dimension_numbers = #tpu.dot_dimension_numbers<[1], [0], [0], [1], [0, 0, 1, 1], [], []>} : vector<8x64xbf16>, vector<64x32xbf16>, vector<8x32xf32> -> vector<8x32xf32>
    %c0_9 = arith.constant 0 : index
    %c0_10 = arith.constant 0 : index
    %12 = vector.load %arg5[%c0_9, %c0_10] : memref<1x32xf32, #tpu.memory_space<vmem>>, vector<1x32xf32>
    %13 = vector.broadcast %12 : vector<1x32xf32> to vector<8x32xf32>
    %14 = arith.addf %11, %13 : vector<8x32xf32>
    %cst_11 = arith.constant 0.000000e+00 : f32
    %15 = vector.broadcast %cst_11 : f32 to vector<8x32xf32>
    %16 = arith.maximumf %14, %15 : vector<8x32xf32>
    %17 = arith.truncf %16 : vector<8x32xf32> to vector<8x32xbf16>
    %c0_12 = arith.constant 0 : index
    %c0_13 = arith.constant 0 : index
    %18 = vector.load %arg6[%c0_12, %c0_13] : memref<32x5xbf16, #tpu.memory_space<vmem>>, vector<32x5xbf16>
    %cst_14 = arith.constant dense<0.000000e+00> : vector<8x5xf32>
    %19 = tpu.matmul %17, %18, %cst_14 {dimension_numbers = #tpu.dot_dimension_numbers<[1], [0], [0], [1], [0, 0, 1, 1], [], []>} : vector<8x32xbf16>, vector<32x5xbf16>, vector<8x5xf32> -> vector<8x5xf32>
    %c0_15 = arith.constant 0 : index
    %c0_16 = arith.constant 0 : index
    %20 = vector.load %arg7[%c0_15, %c0_16] : memref<1x5xf32, #tpu.memory_space<vmem>>, vector<1x5xf32>
    %21 = vector.broadcast %20 : vector<1x5xf32> to vector<8x5xf32>
    %22 = arith.addf %19, %21 : vector<8x5xf32>
    %c0_17 = arith.constant 0 : index
    %c0_18 = arith.constant 0 : index
    %23 = vector.load %arg8[%c0_17, %c0_18] : memref<8x5xf32, #tpu.memory_space<vmem>>, vector<8x5xf32>
    tpu.vector_store %arg8[%c0_17, %c0_18], %22 {strides = array<i32>} : memref<8x5xf32, #tpu.memory_space<vmem>>, vector<8x5xf32>,
    return
  }
  func.func @transform_0(%arg0: i32) -> (i32, i32) {
    %c0_i32 = arith.constant 0 : i32
    %c0_i32_0 = arith.constant 0 : i32
    return %arg0, %c0_i32 : i32, i32
  }
  func.func @transform_1(%arg0: i32) -> (i32, i32) {
    %c0_i32 = arith.constant 0 : i32
    %c0_i32_0 = arith.constant 0 : i32
    %c0_i32_1 = arith.constant 0 : i32
    return %c0_i32, %c0_i32_0 : i32, i32
  }
  func.func @transform_2(%arg0: i32) -> (i32, i32) {
    %c0_i32 = arith.constant 0 : i32
    %c0_i32_0 = arith.constant 0 : i32
    %c0_i32_1 = arith.constant 0 : i32
    return %c0_i32, %c0_i32_0 : i32, i32
  }
  func.func @transform_3(%arg0: i32) -> (i32, i32) {
    %c0_i32 = arith.constant 0 : i32
    %c0_i32_0 = arith.constant 0 : i32
    %c0_i32_1 = arith.constant 0 : i32
    return %c0_i32, %c0_i32_0 : i32, i32
  }
  func.func @transform_4(%arg0: i32) -> (i32, i32) {
    %c0_i32 = arith.constant 0 : i32
    %c0_i32_0 = arith.constant 0 : i32
    %c0_i32_1 = arith.constant 0 : i32
    return %c0_i32, %c0_i32_0 : i32, i32
  }
  func.func @transform_5(%arg0: i32) -> (i32, i32) {
    %c0_i32 = arith.constant 0 : i32
    %c0_i32_0 = arith.constant 0 : i32
    %c0_i32_1 = arith.constant 0 : i32
    return %c0_i32, %c0_i32_0 : i32, i32
  }
  func.func @transform_6(%arg0: i32) -> (i32, i32) {
    %c0_i32 = arith.constant 0 : i32
    %c0_i32_0 = arith.constant 0 : i32
    %c0_i32_1 = arith.constant 0 : i32
    return %c0_i32, %c0_i32_0 : i32, i32
  }
  func.func @transform_7(%arg0: i32) -> (i32, i32) {
    %c0_i32 = arith.constant 0 : i32
    %c0_i32_0 = arith.constant 0 : i32
    return %arg0, %c0_i32 : i32, i32
  }
}

</mosaic_0001>

<llo_original>
// kernel: yoga_pose_classifier.1
$region0: #{yoga_pose_classifier.1}
  #allocation0 [shape = 'u32[]', space=smem, size = 0x4, offset = 0x4, fixed_abs, tag = 'smem constant byte address 0x4 - core index']
  #allocation1 [shape = 'u32[144,128]{1,0:T(1,128)}', space=vmem, size = 0x12000, scoped, tag = 'internal scratch']
  %s0 = inlined_call_operand.vmem [shape: f32[8,34], index: 0, kind: input, shape index: {}]
  %s1 = inlined_call_operand.vmem [shape: bf16[34,64], index: 1, kind: input, shape index: {}]
  %s2 = inlined_call_operand.vmem [shape: f32[1,64], index: 2, kind: input, shape index: {}]
  %s3 = inlined_call_operand.vmem [shape: bf16[64,32], index: 3, kind: input, shape index: {}]
  %s4 = inlined_call_operand.vmem [shape: f32[1,32], index: 4, kind: input, shape index: {}]
  %s5 = inlined_call_operand.vmem [shape: bf16[32,5], index: 5, kind: input, shape index: {}]
  %s6 = inlined_call_operand.vmem [shape: f32[1,5], index: 6, kind: input, shape index: {}]
  %s7 = inlined_call_operand.hbm [shape: f32[8,5], index: 7, kind: output, shape index: {}]
  %s8 = sld [smem:[#allocation0]]
  $region38: #{yoga_pose_classifier.1} parent=0
    _
  %s10 = ssub.s32 1, %s8
  %s11 = scalar_select 0, %s10, %s8
  $region1: #{yoga_pose_classifier.1} parent=0
    #allocation2 [shape = 'u8[4096]{0}', space=vmem, size = 0x1000, scoped, tag = 'output window, operand 0, single buffered']
    #allocation3 [shape = 's32[1]{0}', space=sflag, size = 0x4, scoped, tag = 'scoped memory for yoga_pose_classifier.1']
    %12 = vsyncpa [#allocation3], 0
    // Predicated region
    $region2: #{yoga_pose_classifier.1} parent=1 // pred_check
      _
    $region3: #{yoga_pose_classifier.1} parent=1 // pred_check_branch
      %14 = sbr.rel (0) target = $region5
    $region4: #{yoga_pose_classifier.1} parent=1 // pred_region
      _
    $region5: #{yoga_pose_classifier.1} parent=1 // pred_fallthru
      _
    // Predicated region
    $region6: #{yoga_pose_classifier.1} parent=1 // pred_check
      _
    $region7: #{yoga_pose_classifier.1} parent=1 // pred_check_branch
      %16 = sbr.rel (0) target = $region9
    $region8: #{yoga_pose_classifier.1} parent=1 // pred_region
      _
    $region9: #{yoga_pose_classifier.1} parent=1 // pred_fallthru
      _
    // Predicated region
    $region10: #{yoga_pose_classifier.1} parent=1 // pred_check
      _
    $region11: #{yoga_pose_classifier.1} parent=1 // pred_check_branch
      %18 = sbr.rel (0) target = $region13
    $region12: #{yoga_pose_classifier.1} parent=1 // pred_region
      _
    $region13: #{yoga_pose_classifier.1} parent=1 // pred_fallthru
      _
    // Predicated region
    $region14: #{yoga_pose_classifier.1} parent=1 // pred_check
      _
    $region15: #{yoga_pose_classifier.1} parent=1 // pred_check_branch
      %20 = sbr.rel (0) target = $region17
    $region16: #{yoga_pose_classifier.1} parent=1 // pred_region
      _
    $region17: #{yoga_pose_classifier.1} parent=1 // pred_fallthru
      _
    // Predicated region
    $region18: #{yoga_pose_classifier.1} parent=1 // pred_check
      _
    $region19: #{yoga_pose_classifier.1} parent=1 // pred_check_branch
      %22 = sbr.rel (0) target = $region21
    $region20: #{yoga_pose_classifier.1} parent=1 // pred_region
      _
    $region21: #{yoga_pose_classifier.1} parent=1 // pred_fallthru
      _
    // Predicated region
    $region22: #{yoga_pose_classifier.1} parent=1 // pred_check
      _
    $region23: #{yoga_pose_classifier.1} parent=1 // pred_check_branch
      %24 = sbr.rel (0) target = $region25
    $region24: #{yoga_pose_classifier.1} parent=1 // pred_region
      _
    $region25: #{yoga_pose_classifier.1} parent=1 // pred_fallthru
      _
    // Predicated region
    $region26: #{yoga_pose_classifier.1} parent=1 // pred_check
      _
    $region27: #{yoga_pose_classifier.1} parent=1 // pred_check_branch
      %26 = sbr.rel (0) target = $region29
    $region28: #{yoga_pose_classifier.1} parent=1 // pred_region
      _
    $region29: #{yoga_pose_classifier.1} parent=1 // pred_fallthru
      _
    %v28 = vld [vmem:[%s0] sm:$0xff]
    %v29 = vpack.c.bf16 %v28, %v28
    %v30 = vld [vmem:[%s1] sm:$0xf]
    %v31 = vld [vmem:[%s1 + $0x4] sm:$0xf]
    %v32 = vld [vmem:[%s1 + $0x8] sm:$0xf]
    %v33 = vld [vmem:[%s1 + $0xc] sm:$0xf]
    %v34 = vld [vmem:[%s1 + $0x10] sm:$0x1]
    %v35 = vld [vmem:[%s2] sm:$0x1]
    %v37 = vlaneseq
    %v38 = vshrl.u32 %v37, 7
    %v39 = vsub.s32 0, %v38
    %v40 = vrot.slane %v35, %v39
    %v47 = vunpack.c.l.b16 %v30
    %v48 = vunpack.c.l.b16 %v31
    %v49 = vunpack.c.l.b16 %v32
    %v50 = vunpack.c.l.b16 %v33
    %v51 = vunpack.c.l.b16 %v34
    %v52 = vpack.c.b16 %v48, %v47
    %v53 = vpack.c.b16 %v50, %v49
    %v54 = vpack.c.b16 %v51, %v51
    %vm57 = vcmask 277504
    %v59 = vsel %vm57, %v29, 0
    %vm61 = vcmask 1040384
    %v63 = vsel %vm61, %v54, 0
    %65 = vmatprep.subr.bf16.mxu0 0
    %66 = vmatpush1.bf16.msra.mxu0 %v52
    %67 = vmatprep.subr.bf16.mxu0 0
    %68 = vmatpush1.bf16.msra.mxu0 %v53
    %69 = vmatprep.subr.bf16.mxu0 0
    %70 = vmatpush1.bf16.msra.mxu0 %v63
    %71 = vmatprep.subr.bf16.mxu0 0
    %72 = vmatpush1.bf16.msra.mxu0 0
    %73 = vmatprep.subr.bf16.mxu0 0
    %74 = vmatpush1.bf16.msra.mxu0 0
    %75 = vmatprep.subr.bf16.mxu0 0
    %76 = vmatpush1.bf16.msra.mxu0 0
    %77 = vmatprep.subr.bf16.mxu0 0
    %78 = vmatpush1.bf16.msra.mxu0 0
    %79 = vmatprep.subr.bf16.mxu0 0
    %80 = vmatpush1.bf16.msra.mxu0 0
    %81 = vmatprep.subr.bf16.mxu0 0
    %82 = vmatpush1.bf16.msra.mxu0 0
    %83 = vmatprep.subr.bf16.mxu0 0
    %84 = vmatpush1.bf16.msra.mxu0 0
    %85 = vmatprep.subr.bf16.mxu0 0
    %86 = vmatpush1.bf16.msra.mxu0 0
    %87 = vmatprep.subr.bf16.mxu0 0
    %88 = vmatpush1.bf16.msra.mxu0 0
    %89 = vmatprep.subr.bf16.mxu0 0
    %90 = vmatpush1.bf16.msra.mxu0 0
    %91 = vmatprep.subr.bf16.mxu0 0
    %92 = vmatpush1.bf16.msra.mxu0 0
    %93 = vmatprep.subr.bf16.mxu0 0
    %94 = vmatpush1.bf16.msra.mxu0 0
    %95 = vmatprep.subr.bf16.mxu0 0
    %96 = vmatpush1.bf16.msra.mxu0 0
    %97 = vmatprep.mubr.bf16.mxu0 0
    %98 = vmatmul.mubr.bf16.gmra.mrb[0].mxu0 %v59
    %v99 = vpop.f32.mrb[0].mxu0
    %v100 = vadd.f32 %v40, %v99
    %v101 = vpop.f32.mrb[0].mxu0
    %v102 = vpop.f32.mrb[0].mxu0
    %v103 = vpop.f32.mrb[0].mxu0
    %104 = vdwg.mxu0
    %v105 = vmax.f32 %v100, 0.0
    %v106 = vpack.c.bf16 %v105, %v105
    %v107 = vld [vmem:[%s3] sm:$0xf]
    %v108 = vld [vmem:[%s3 + $0x4] sm:$0xf]
    %v109 = vld [vmem:[%s3 + $0x8] sm:$0xf]
    %v110 = vld [vmem:[%s3 + $0xc] sm:$0xf]
    %v111 = vld [vmem:[%s3 + $0x10] sm:$0xf]
    %v112 = vld [vmem:[%s3 + $0x14] sm:$0xf]
    %v113 = vld [vmem:[%s3 + $0x18] sm:$0xf]
    %v114 = vld [vmem:[%s3 + $0x1c] sm:$0xf]
    %v115 = vld [vmem:[%s4] sm:$0x1]
    %v117 = vlaneseq
    %v118 = vshrl.u32 %v117, 7
    %v119 = vsub.s32 0, %v118
    %v120 = vrot.slane %v115, %v119
    %v130 = vunpack.c.l.b16 %v107
    %v131 = vunpack.c.l.b16 %v108
    %v132 = vunpack.c.l.b16 %v109
    %v133 = vunpack.c.l.b16 %v110
    %v134 = vunpack.c.l.b16 %v111
    %v135 = vunpack.c.l.b16 %v112
    %v136 = vunpack.c.l.b16 %v113
    %v137 = vunpack.c.l.b16 %v114
    %v138 = vpack.c.b16 %v131, %v130
    %v139 = vpack.c.b16 %v133, %v132
    %v140 = vpack.c.b16 %v135, %v134
    %v141 = vpack.c.b16 %v137, %v136
    %vm146 = vcmask 523264
    %v148 = vsel %vm146, %v106, 0
    %150 = vmatprep.subr.bf16.mxu0 0
    %151 = vmatpush1.bf16.msra.mxu0 %v138
    %152 = vmatprep.subr.bf16.mxu0 0
    %153 = vmatpush1.bf16.msra.mxu0 %v139
    %154 = vmatprep.subr.bf16.mxu0 0
    %155 = vmatpush1.bf16.msra.mxu0 %v140
    %156 = vmatprep.subr.bf16.mxu0 0
    %157 = vmatpush1.bf16.msra.mxu0 %v141
    %158 = vmatprep.subr.bf16.mxu0 0
    %159 = vmatpush1.bf16.msra.mxu0 0
    %160 = vmatprep.subr.bf16.mxu0 0
    %161 = vmatpush1.bf16.msra.mxu0 0
    %162 = vmatprep.subr.bf16.mxu0 0
    %163 = vmatpush1.bf16.msra.mxu0 0
    %164 = vmatprep.subr.bf16.mxu0 0
    %165 = vmatpush1.bf16.msra.mxu0 0
    %166 = vmatprep.subr.bf16.mxu0 0
    %167 = vmatpush1.bf16.msra.mxu0 0
    %168 = vmatprep.subr.bf16.mxu0 0
    %169 = vmatpush1.bf16.msra.mxu0 0
    %170 = vmatprep.subr.bf16.mxu0 0
    %171 = vmatpush1.bf16.msra.mxu0 0
    %172 = vmatprep.subr.bf16.mxu0 0
    %173 = vmatpush1.bf16.msra.mxu0 0
    %174 = vmatprep.subr.bf16.mxu0 0
    %175 = vmatpush1.bf16.msra.mxu0 0
    %176 = vmatprep.subr.bf16.mxu0 0
    %177 = vmatpush1.bf16.msra.mxu0 0
    %178 = vmatprep.subr.bf16.mxu0 0
    %179 = vmatpush1.bf16.msra.mxu0 0
    %180 = vmatprep.subr.bf16.mxu0 0
    %181 = vmatpush1.bf16.msra.mxu0 0
    %182 = vmatprep.mubr.bf16.mxu0 0
    %183 = vmatmul.mubr.bf16.gmra.mrb[0].mxu0 %v148
    %v184 = vpop.f32.mrb[0].mxu0
    %v185 = vadd.f32 %v120, %v184
    %v186 = vpop.f32.mrb[0].mxu0
    %v187 = vpop.f32.mrb[0].mxu0
    %v188 = vpop.f32.mrb[0].mxu0
    %189 = vdwg.mxu0
    %v190 = vmax.f32 %v185, 0.0
    %v191 = vpack.c.bf16 %v190, %v190
    %v192 = vld [vmem:[%s5] sm:$0xf]
    %v193 = vld [vmem:[%s5 + $0x4] sm:$0xf]
    %v194 = vld [vmem:[%s5 + $0x8] sm:$0xf]
    %v195 = vld [vmem:[%s5 + $0xc] sm:$0xf]
    %v196 = vld [vmem:[%s6] sm:$0x1]
    %v198 = vlaneseq
    %v199 = vshrl.u32 %v198, 7
    %v200 = vsub.s32 0, %v199
    %v201 = vrot.slane %v196, %v200
    %v207 = vunpack.c.l.b16 %v192
    %v208 = vunpack.c.l.b16 %v193
    %v209 = vunpack.c.l.b16 %v194
    %v210 = vunpack.c.l.b16 %v195
    %v211 = vpack.c.b16 %v208, %v207
    %v212 = vpack.c.b16 %v210, %v209
    %vm215 = vcmask 261120
    %v217 = vsel %vm215, %v191, 0
    %219 = vmatprep.subr.bf16.mxu0 0
    %220 = vmatpush1.bf16.msra.mxu0 %v211
    %221 = vmatprep.subr.bf16.mxu0 0
    %222 = vmatpush1.bf16.msra.mxu0 %v212
    %223 = vmatprep.subr.bf16.mxu0 0
    %224 = vmatpush1.bf16.msra.mxu0 0
    %225 = vmatprep.subr.bf16.mxu0 0
    %226 = vmatpush1.bf16.msra.mxu0 0
    %227 = vmatprep.subr.bf16.mxu0 0
    %228 = vmatpush1.bf16.msra.mxu0 0
    %229 = vmatprep.subr.bf16.mxu0 0
    %230 = vmatpush1.bf16.msra.mxu0 0
    %231 = vmatprep.subr.bf16.mxu0 0
    %232 = vmatpush1.bf16.msra.mxu0 0
    %233 = vmatprep.subr.bf16.mxu0 0
    %234 = vmatpush1.bf16.msra.mxu0 0
    %235 = vmatprep.subr.bf16.mxu0 0
    %236 = vmatpush1.bf16.msra.mxu0 0
    %237 = vmatprep.subr.bf16.mxu0 0
    %238 = vmatpush1.bf16.msra.mxu0 0
    %239 = vmatprep.subr.bf16.mxu0 0
    %240 = vmatpush1.bf16.msra.mxu0 0
    %241 = vmatprep.subr.bf16.mxu0 0
    %242 = vmatpush1.bf16.msra.mxu0 0
    %243 = vmatprep.subr.bf16.mxu0 0
    %244 = vmatpush1.bf16.msra.mxu0 0
    %245 = vmatprep.subr.bf16.mxu0 0
    %246 = vmatpush1.bf16.msra.mxu0 0
    %247 = vmatprep.subr.bf16.mxu0 0
    %248 = vmatpush1.bf16.msra.mxu0 0
    %249 = vmatprep.subr.bf16.mxu0 0
    %250 = vmatpush1.bf16.msra.mxu0 0
    %251 = vmatprep.mubr.bf16.mxu0 0
    %252 = vmatmul.mubr.bf16.gmra.mrb[0].mxu0 %v217
    %v253 = vpop.f32.mrb[0].mxu0
    %v254 = vadd.f32 %v201, %v253
    %v255 = vpop.f32.mrb[0].mxu0
    %v256 = vpop.f32.mrb[0].mxu0
    %v257 = vpop.f32.mrb[0].mxu0
    %258 = vdwg.mxu0
    %vm259 = vcmask 39936
    %260 = vst.msk [vmem:[#allocation2] sm:$0xff] %vm259, %v254
    // Predicated region
    $region30: #{yoga_pose_classifier.1} parent=1 // pred_check
      _
    $region31: #{yoga_pose_classifier.1} parent=1 // pred_check_branch
      %262 = sbr.rel (0) target = $region33
    $region32: #{yoga_pose_classifier.1} parent=1 // pred_region
      %s264 = ssub.s32 128, 128
      %265 = vsyncadd [#allocation3], %s264
      %s267 = sshll.u32 [#allocation2], 4
      %s268 = int_to_ptr.vmem [resolvable:$true] %s267
      %270 = dma.vmem_to_hbm [thread:$0]  %s268, 128, %s7, [#allocation3]
    $region33: #{yoga_pose_classifier.1} parent=1 // pred_fallthru
      _
    // Predicated region
    $region34: #{yoga_pose_classifier.1} parent=1 // pred_check
      _
    $region35: #{yoga_pose_classifier.1} parent=1 // pred_check_branch
      %272 = sbr.rel (0) target = $region37
    $region36: #{yoga_pose_classifier.1} parent=1 // pred_region
      %273 = dma.done [#allocation3], 128
    $region37: #{yoga_pose_classifier.1} parent=1 // pred_fallthru
      _
    %274 = vsyncpa [#allocation3], 1

</llo_original>
